<compile_context>
chip_gen: v7x
topology: tpu7x:2x2x1
jax: 0.10.0
libtpu: 0.0.40
codegen_flags: <defaults>
</compile_context>

<pallas_src>
import functools

import jax
import jax.numpy as jnp
from jax.experimental import pallas as pl
from jax.experimental.pallas import tpu as pltpu


def _weights_kernel(x_ref, w1t_ref, b1_ref, w_ref):
    """weights = x @ W1^T + b1  (tiny pre-pass, runs once)."""
    w = jnp.dot(x_ref[...], w1t_ref[...], preferred_element_type=jnp.float32)
    w = w + b1_ref[...]
    w_ref[...] = w.astype(w_ref.dtype)


def _luts_kernel(w_ref, w2t_ref, luts_ref):
    """luts[:, tile] = weights @ W2^T[:, tile]   (streamed over D tiles)."""
    w = w_ref[...]            # (B, n_ranks), invariant across the D-tile grid
    w2t = w2t_ref[...]        # (n_ranks, tile_d)
    if w.dtype != w2t.dtype:  # e.g. bf16-narrowed W2 stream
        w = w.astype(w2t.dtype)
    luts = jnp.dot(w, w2t, preferred_element_type=jnp.float32)
    luts_ref[...] = luts.astype(luts_ref.dtype)


@functools.partial(jax.jit, static_argnames=("n_colors", "n_vertices", "tile_d"))
def lut_generator_forward(x, w1, b1, w2t, n_colors, n_vertices,
                          weights_delta=None, tile_d=2048):
    """Pallas implementation of LUTGenerator.forward.

    Args:
      x:   (B, n_feats) image representation vectors.
      w1:  (n_ranks, n_feats)  weights_generator.weight
      b1:  (n_ranks,)          weights_generator.bias
      w2t: (n_ranks, n_colors * n_vertices**n_colors)
           basis_luts_bank.weight stored PRE-TRANSPOSED (== W2^T).  This is a
           one-time storage choice; it removes a per-call HBM transpose of the
           dominant byte stream.
      weights_delta: optional, broadcastable to w1; applies W1 * (1 + delta).
      tile_d: D-tile width (multiple of 128).  Sweep 1024-4096 at real sizes.

    Returns:
      weights: (B, n_ranks)
      luts:    (B, n_colors, n_vertices, ..., n_vertices)
    """
    if weights_delta is not None:
        w1 = w1 * (1.0 + weights_delta)

    B, n_feats = x.shape
    n_ranks = w1.shape[0]
    D = w2t.shape[1]                          # n_colors * n_vertices**n_colors

    w1t = jnp.transpose(w1)                   # tiny (n_feats, n_ranks); negligible
    b1_2d = b1.reshape(1, n_ranks)

    itemsize = jnp.dtype(x.dtype).itemsize
    w2_itemsize = jnp.dtype(w2t.dtype).itemsize

    # ---- Pass 1: weights = x @ W1^T + b1 (tiny, one grid step) -------------
    weights = pl.pallas_call(
        _weights_kernel,
        out_shape=jax.ShapeDtypeStruct((B, n_ranks), x.dtype),
        grid_spec=pltpu.PrefetchScalarGridSpec(
            num_scalar_prefetch=0,
            grid=(1,),
            in_specs=[
                pl.BlockSpec((B, n_feats), lambda i: (0, 0)),
                pl.BlockSpec((n_feats, n_ranks), lambda i: (0, 0)),
                pl.BlockSpec((1, n_ranks), lambda i: (0, 0)),
            ],
            out_specs=pl.BlockSpec((B, n_ranks), lambda i: (0, 0)),
        ),
        compiler_params=pltpu.CompilerParams(
            dimension_semantics=("arbitrary",)),
        cost_estimate=pl.CostEstimate(
            flops=2 * B * n_feats * n_ranks,
            transcendentals=0,
            bytes_accessed=itemsize * (B * n_feats + n_feats * n_ranks
                                       + B * n_ranks),
        ),
    )(x, w1t, b1_2d)

    # ---- Pass 2: luts = weights @ W2^T, streamed over D tiles ---------------
    td = min(int(tile_d), D)
    if td != D:
        td = max(128, (td // 128) * 128)      # block lane-dim must be %128
    nd = pl.cdiv(D, td)                       # ragged last tile handled by Pallas

    luts_flat = pl.pallas_call(
        _luts_kernel,
        out_shape=jax.ShapeDtypeStruct((B, D), x.dtype),
        grid_spec=pltpu.PrefetchScalarGridSpec(
            num_scalar_prefetch=0,
            grid=(nd,),
            in_specs=[
                pl.BlockSpec((B, n_ranks), lambda i: (0, 0)),   # held resident
                pl.BlockSpec((n_ranks, td), lambda i: (0, i)),  # W2^T stream
            ],
            out_specs=pl.BlockSpec((B, td), lambda i: (0, i)),  # lane-dense
        ),
        compiler_params=pltpu.CompilerParams(
            # Output tiles are disjoint along this axis -> safe to shard the
            # D stream across both TensorCores on v7x; no-op on v5e/v6e.
            dimension_semantics=("parallel",)),
        cost_estimate=pl.CostEstimate(
            flops=2 * B * n_ranks * D,
            transcendentals=0,
            bytes_accessed=(w2_itemsize * n_ranks * D
                            + itemsize * (B * D + B * n_ranks)),
        ),
    )(weights, w2t)

    luts = luts_flat.reshape((B, -1) + (n_vertices,) * n_colors)
    return weights, luts


def make_params(key, n_colors, n_vertices, n_feats, n_ranks):
    """Deterministic parameter init mirroring LUTGenerator.init_weights().

    Note: the basis-LUT bank is returned already transposed, shape
    (n_ranks, D) == W2^T, so the hot path never transposes it.
    """
    (k1,) = jax.random.split(key, 1)

    # weights_generator: Linear(n_feats, n_ranks). Weight: small deterministic
    # random (PyTorch default uniform); bias: ones (per init_weights).
    bound = 1.0 / jnp.sqrt(jnp.float32(n_feats))
    w1 = jax.random.uniform(k1, (n_ranks, n_feats), jnp.float32, -bound, bound)
    b1 = jnp.ones((n_ranks,), jnp.float32)

    # basis_luts_bank: Linear(n_ranks, n_colors * V**n_colors, bias=False).
    # init_weights(): first rank = identity LUT, remaining ranks = zeros.
    V = n_vertices
    grids = jnp.meshgrid(*[jnp.arange(V, dtype=jnp.float32)] * n_colors,
                         indexing="ij")
    identity = jnp.stack(grids, axis=0) / float(V - 1)        # (n_colors, V,...,V)
    identity = jnp.flip(identity, axis=0)                     # .flip(0)
    identity_flat = identity.reshape(1, -1)                   # (1, n_colors*V**C)
    zeros = jnp.zeros((n_ranks - 1, identity_flat.shape[1]), jnp.float32)
    w2t = jnp.concatenate([identity_flat, zeros], axis=0)     # (n_ranks, D) = W2^T
    return w1, b1, w2t


def reference_forward(x, w1, b1, w2t, n_colors, n_vertices, weights_delta=None):
    """Pure-JAX reference matching the PyTorch module (W2 given transposed)."""
    w1_eff = w1 * (1.0 + weights_delta) if weights_delta is not None else w1
    weights = x @ w1_eff.T + b1
    luts = weights @ w2t.astype(jnp.float32)
    luts = luts.reshape((x.shape[0], -1) + (n_vertices,) * n_colors)
    return weights, luts


if __name__ == "__main__":
    n_colors, n_vertices, n_feats, n_ranks = 3, 8, 32, 8
    B = 2
    D = n_colors * n_vertices ** n_colors                     # 1536

    key = jax.random.PRNGKey(0)
    kx, kp, kd = jax.random.split(key, 3)

    x = jax.random.normal(kx, (B, n_feats), jnp.float32)
    w1, b1, w2t = make_params(kp, n_colors, n_vertices, n_feats, n_ranks)
    weights_delta = 0.1 * jax.random.normal(kd, (n_ranks, n_feats), jnp.float32)

    # Path 1: no delta; tile_d=512 -> grid of 3 evenly divided D tiles.
    weights, luts = lut_generator_forward(
        x, w1, b1, w2t, n_colors, n_vertices, tile_d=512)
    weights, luts = jax.block_until_ready((weights, luts))
    w_ref, l_ref = reference_forward(x, w1, b1, w2t, n_colors, n_vertices)
    assert weights.shape == (B, n_ranks)
    assert luts.shape == (B, n_colors, n_vertices, n_vertices, n_vertices)
    assert jnp.allclose(weights, w_ref, atol=1e-5, rtol=1e-5)
    assert jnp.allclose(luts, l_ref, atol=1e-5, rtol=1e-5)

    # Path 2: with weights_delta; tile_d=1024 -> ragged last tile (D=1536),
    # exercising the pl.cdiv / edge-block masking path needed for V=33.
    weights_d, luts_d = lut_generator_forward(
        x, w1, b1, w2t, n_colors, n_vertices,
        weights_delta=weights_delta, tile_d=1024)
    weights_d, luts_d = jax.block_until_ready((weights_d, luts_d))
    w_ref_d, l_ref_d = reference_forward(
        x, w1, b1, w2t, n_colors, n_vertices, weights_delta=weights_delta)
    assert jnp.allclose(weights_d, w_ref_d, atol=1e-5, rtol=1e-5)
    assert jnp.allclose(luts_d, l_ref_d, atol=1e-5, rtol=1e-5)

    # Path 3: narrowed (bf16) W2 stream -- halves the dominant HBM traffic.
    w2t_bf16 = w2t.astype(jnp.bfloat16)
    weights_b, luts_b = lut_generator_forward(
        x, w1, b1, w2t_bf16, n_colors, n_vertices, tile_d=512)
    weights_b, luts_b = jax.block_until_ready((weights_b, luts_b))
    w_ref_b, l_ref_b = reference_forward(
        x, w1, b1, w2t_bf16, n_colors, n_vertices)
    assert jnp.allclose(weights_b, w_ref_b, atol=1e-5, rtol=1e-5)
    assert jnp.allclose(luts_b, l_ref_b, atol=3e-2, rtol=3e-2)

    print("KERNEL_OK")
</pallas_src>

<mosaic_0001>
module attributes {stable_mosaic.version = 11 : i64} {
  func.func @_weights_kernel(%arg0: i32, %arg1: memref<2x32xf32, #tpu.memory_space<vmem>>, %arg2: memref<32x8xf32, #tpu.memory_space<vmem>>, %arg3: memref<1x8xf32, #tpu.memory_space<vmem>>, %arg4: memref<2x8xf32, #tpu.memory_space<vmem>>) attributes {dimension_semantics = [#tpu.dimension_semantics<arbitrary>], iteration_bounds = array<i64: 1>, scalar_prefetch = 0 : i64, scratch_operands = 0 : i64, tpu.core_type = #tpu.core_type<tc>, window_params = [{pipeline_mode = #tpu.pipeline_mode<synchronous>, transform_indices = @transform_0, window_bounds = array<i64: 2, 32>}, {pipeline_mode = #tpu.pipeline_mode<synchronous>, transform_indices = @transform_1, window_bounds = array<i64: 32, 8>}, {pipeline_mode = #tpu.pipeline_mode<synchronous>, transform_indices = @transform_2, window_bounds = array<i64: 1, 8>}, {pipeline_mode = #tpu.pipeline_mode<synchronous>, transform_indices = @transform_3, window_bounds = array<i64: 2, 8>}]} {
    %c0 = arith.constant 0 : index
    %c0_0 = arith.constant 0 : index
    %0 = vector.load %arg1[%c0, %c0_0] : memref<2x32xf32, #tpu.memory_space<vmem>>, vector<2x32xf32>
    %c0_1 = arith.constant 0 : index
    %c0_2 = arith.constant 0 : index
    %1 = vector.load %arg2[%c0_1, %c0_2] : memref<32x8xf32, #tpu.memory_space<vmem>>, vector<32x8xf32>
    %cst = arith.constant dense<0.000000e+00> : vector<2x8xf32>
    %2 = tpu.matmul %0, %1, %cst {dimension_numbers = #tpu.dot_dimension_numbers<[1], [0], [0], [1], [0, 0, 1, 1], [], []>} : vector<2x32xf32>, vector<32x8xf32>, vector<2x8xf32> -> vector<2x8xf32>
    %c0_3 = arith.constant 0 : index
    %c0_4 = arith.constant 0 : index
    %3 = vector.load %arg3[%c0_3, %c0_4] : memref<1x8xf32, #tpu.memory_space<vmem>>, vector<1x8xf32>
    %4 = vector.broadcast %3 : vector<1x8xf32> to vector<2x8xf32>
    %5 = arith.addf %2, %4 : vector<2x8xf32>
    %c0_5 = arith.constant 0 : index
    %c0_6 = arith.constant 0 : index
    %6 = vector.load %arg4[%c0_5, %c0_6] : memref<2x8xf32, #tpu.memory_space<vmem>>, vector<2x8xf32>
    tpu.vector_store %arg4[%c0_5, %c0_6], %5 {strides = array<i32>} : memref<2x8xf32, #tpu.memory_space<vmem>>, vector<2x8xf32>,
    return
  }
  func.func @transform_0(%arg0: i32) -> (i32, i32) {
    %c0_i32 = arith.constant 0 : i32
    %c0_i32_0 = arith.constant 0 : i32
    %c0_i32_1 = arith.constant 0 : i32
    return %c0_i32, %c0_i32_0 : i32, i32
  }
  func.func @transform_1(%arg0: i32) -> (i32, i32) {
    %c0_i32 = arith.constant 0 : i32
    %c0_i32_0 = arith.constant 0 : i32
    %c0_i32_1 = arith.constant 0 : i32
    return %c0_i32, %c0_i32_0 : i32, i32
  }
  func.func @transform_2(%arg0: i32) -> (i32, i32) {
    %c0_i32 = arith.constant 0 : i32
    %c0_i32_0 = arith.constant 0 : i32
    %c0_i32_1 = arith.constant 0 : i32
    return %c0_i32, %c0_i32_0 : i32, i32
  }
  func.func @transform_3(%arg0: i32) -> (i32, i32) {
    %c0_i32 = arith.constant 0 : i32
    %c0_i32_0 = arith.constant 0 : i32
    %c0_i32_1 = arith.constant 0 : i32
    return %c0_i32, %c0_i32_0 : i32, i32
  }
}

module attributes {stable_mosaic.version = 11 : i64} {
  func.func @_luts_kernel(%arg0: i32, %arg1: memref<2x8xf32, #tpu.memory_space<vmem>>, %arg2: memref<8x512xf32, #tpu.memory_space<vmem>>, %arg3: memref<2x512xf32, #tpu.memory_space<vmem>>) attributes {dimension_semantics = [#tpu.dimension_semantics<parallel>], iteration_bounds = array<i64: 3>, scalar_prefetch = 0 : i64, scratch_operands = 0 : i64, tpu.core_type = #tpu.core_type<tc>, window_params = [{pipeline_mode = #tpu.pipeline_mode<synchronous>, transform_indices = @transform_0, window_bounds = array<i64: 2, 8>}, {transform_indices = @transform_1, window_bounds = array<i64: 8, 512>}, {transform_indices = @transform_2, window_bounds = array<i64: 2, 512>}]} {
    %c0 = arith.constant 0 : index
    %c0_0 = arith.constant 0 : index
    %0 = vector.load %arg1[%c0, %c0_0] : memref<2x8xf32, #tpu.memory_space<vmem>>, vector<2x8xf32>
    %c0_1 = arith.constant 0 : index
    %c0_2 = arith.constant 0 : index
    %1 = vector.load %arg2[%c0_1, %c0_2] : memref<8x512xf32, #tpu.memory_space<vmem>>, vector<8x512xf32>
    %cst = arith.constant dense<0.000000e+00> : vector<2x512xf32>
    %2 = tpu.matmul %0, %1, %cst {dimension_numbers = #tpu.dot_dimension_numbers<[1], [0], [0], [1], [0, 0, 1, 1], [], []>} : vector<2x8xf32>, vector<8x512xf32>, vector<2x512xf32> -> vector<2x512xf32>
    %c0_3 = arith.constant 0 : index
    %c0_4 = arith.constant 0 : index
    %3 = vector.load %arg3[%c0_3, %c0_4] : memref<2x512xf32, #tpu.memory_space<vmem>>, vector<2x512xf32>
    tpu.vector_store %arg3[%c0_3, %c0_4], %2 {strides = array<i32>} : memref<2x512xf32, #tpu.memory_space<vmem>>, vector<2x512xf32>,
    return
  }
  func.func @transform_0(%arg0: i32) -> (i32, i32) {
    %c0_i32 = arith.constant 0 : i32
    %c0_i32_0 = arith.constant 0 : i32
    %c0_i32_1 = arith.constant 0 : i32
    return %c0_i32, %c0_i32_0 : i32, i32
  }
  func.func @transform_1(%arg0: i32) -> (i32, i32) {
    %c0_i32 = arith.constant 0 : i32
    %c0_i32_0 = arith.constant 0 : i32
    return %c0_i32, %arg0 : i32, i32
  }
  func.func @transform_2(%arg0: i32) -> (i32, i32) {
    %c0_i32 = arith.constant 0 : i32
    %c0_i32_0 = arith.constant 0 : i32
    return %c0_i32, %arg0 : i32, i32
  }
}

</mosaic_0001>

<llo_original>
// kernel: lut_generator_forward.2
$region0: #{lut_generator_forward.2}
  #allocation0 [shape = 'u32[]', space=smem, size = 0x4, offset = 0x4, fixed_abs, tag = 'smem constant byte address 0x4 - core index']
  #allocation1 [shape = 'u32[144,128]{1,0:T(1,128)}', space=vmem, size = 0x12000, scoped, tag = 'internal scratch']
  %s0 = inlined_call_operand.vmem [shape: f32[2,32], index: 0, kind: input, shape index: {}]
  %s1 = inlined_call_operand.vmem [shape: f32[32,8], index: 1, kind: input, shape index: {}]
  %s2 = inlined_call_operand.vmem [shape: f32[1,8], index: 2, kind: input, shape index: {}]
  %s3 = inlined_call_operand.vmem [shape: f32[2,8], index: 3, kind: output, shape index: {}]
  %s4 = sld [smem:[#allocation0]]
  $region22: #{lut_generator_forward.2} parent=0
    _
  %s6 = ssub.s32 1, %s4
  %s7 = scalar_select 0, %s6, %s4
  // Predicated region
  $region2: #{lut_generator_forward.2} parent=0 // pred_check
    _
  $region3: #{lut_generator_forward.2} parent=0 // pred_check_branch
    %9 = sbr.rel (0) target = $region5
  $region4: #{lut_generator_forward.2} parent=0 // pred_region
    _
  $region5: #{lut_generator_forward.2} parent=0 // pred_fallthru
    _
  // Predicated region
  $region6: #{lut_generator_forward.2} parent=0 // pred_check
    _
  $region7: #{lut_generator_forward.2} parent=0 // pred_check_branch
    %11 = sbr.rel (0) target = $region9
  $region8: #{lut_generator_forward.2} parent=0 // pred_region
    _
  $region9: #{lut_generator_forward.2} parent=0 // pred_fallthru
    _
  // Predicated region
  $region10: #{lut_generator_forward.2} parent=0 // pred_check
    _
  $region11: #{lut_generator_forward.2} parent=0 // pred_check_branch
    %13 = sbr.rel (0) target = $region13
  $region12: #{lut_generator_forward.2} parent=0 // pred_region
    _
  $region13: #{lut_generator_forward.2} parent=0 // pred_fallthru
    _
  %v14 = vld [vmem:[%s0] sm:$0x3]
  %v15 = vld [vmem:[%s1] sm:$0xff]
  %v16 = vld [vmem:[%s1 + $0x8] sm:$0xff]
  %v17 = vld [vmem:[%s1 + $0x10] sm:$0xff]
  %v18 = vld [vmem:[%s1 + $0x18] sm:$0xff]
  %v19 = vld [vmem:[%s2] sm:$0x1]
  %v21 = vlaneseq
  %v22 = vshrl.u32 %v21, 7
  %v23 = vsub.s32 0, %v22
  %v24 = vrot.slane %v19, %v23
  %vm26 = vcmask 261120
  %v28 = vsel %vm26, %v14, 0
  %30 = vmatprep.subr.mxu0 0.0
  %31 = vmatpush1.msra.mxu0 %v15
  %32 = vmatprep.subr.mxu0 0.0
  %33 = vmatpush1.msra.mxu0 %v16
  %34 = vmatprep.subr.mxu0 0.0
  %35 = vmatpush1.msra.mxu0 %v17
  %36 = vmatprep.subr.mxu0 0.0
  %37 = vmatpush1.msra.mxu0 %v18
  %38 = vmatprep.subr.mxu0 0.0
  %39 = vmatpush1.msra.mxu0 0.0
  %40 = vmatprep.subr.mxu0 0.0
  %41 = vmatpush1.msra.mxu0 0.0
  %42 = vmatprep.subr.mxu0 0.0
  %43 = vmatpush1.msra.mxu0 0.0
  %44 = vmatprep.subr.mxu0 0.0
  %45 = vmatpush1.msra.mxu0 0.0
  %46 = vmatprep.subr.mxu0 0.0
  %47 = vmatpush1.msra.mxu0 0.0
  %48 = vmatprep.subr.mxu0 0.0
  %49 = vmatpush1.msra.mxu0 0.0
  %50 = vmatprep.subr.mxu0 0.0
  %51 = vmatpush1.msra.mxu0 0.0
  %52 = vmatprep.subr.mxu0 0.0
  %53 = vmatpush1.msra.mxu0 0.0
  %54 = vmatprep.subr.mxu0 0.0
  %55 = vmatpush1.msra.mxu0 0.0
  %56 = vmatprep.subr.mxu0 0.0
  %57 = vmatpush1.msra.mxu0 0.0
  %58 = vmatprep.subr.mxu0 0.0
  %59 = vmatpush1.msra.mxu0 0.0
  %60 = vmatprep.subr.mxu0 0.0
  %61 = vmatpush1.msra.mxu0 0.0
  %62 = vmatprep.subr.mxu0 0.0
  %63 = vmatpush1.msra.mxu0 0.0
  %64 = vmatprep.subr.mxu0 0.0
  %65 = vmatpush1.msra.mxu0 0.0
  %66 = vmatprep.subr.mxu0 0.0
  %67 = vmatpush1.msra.mxu0 0.0
  %68 = vmatprep.subr.mxu0 0.0
  %69 = vmatpush1.msra.mxu0 0.0
  %70 = vmatprep.subr.mxu0 0.0
  %71 = vmatpush1.msra.mxu0 0.0
  %72 = vmatprep.subr.mxu0 0.0
  %73 = vmatpush1.msra.mxu0 0.0
  %74 = vmatprep.subr.mxu0 0.0
  %75 = vmatpush1.msra.mxu0 0.0
  %76 = vmatprep.subr.mxu0 0.0
  %77 = vmatpush1.msra.mxu0 0.0
  %78 = vmatprep.subr.mxu0 0.0
  %79 = vmatpush1.msra.mxu0 0.0
  %80 = vmatprep.subr.mxu0 0.0
  %81 = vmatpush1.msra.mxu0 0.0
  %82 = vmatprep.subr.mxu0 0.0
  %83 = vmatpush1.msra.mxu0 0.0
  %84 = vmatprep.subr.mxu0 0.0
  %85 = vmatpush1.msra.mxu0 0.0
  %86 = vmatprep.subr.mxu0 0.0
  %87 = vmatpush1.msra.mxu0 0.0
  %88 = vmatprep.subr.mxu0 0.0
  %89 = vmatpush1.msra.mxu0 0.0
  %90 = vmatprep.subr.mxu0 0.0
  %91 = vmatpush1.msra.mxu0 0.0
  %92 = vmatprep.subr.mxu0 0.0
  %93 = vmatpush1.msra.mxu0 0.0
  %94 = vmatprep.mubr.f32.mxu0 0.0
  %95 = vmatmul.mubr.f32.gmra.mrb[0].mxu0 %v28
  %v96 = vpop.f32.mrb[0].mxu0
  %v97 = vadd.f32 %v24, %v96
  %v98 = vpop.f32.mrb[0].mxu0
  %99 = vdwg.mxu0
  %vm100 = vcmask 58368
  %101 = vst.msk [vmem:[%s3] sm:$0x3] %vm100, %v97
  // Predicated region
  $region14: #{lut_generator_forward.2} parent=0 // pred_check
    _
  $region15: #{lut_generator_forward.2} parent=0 // pred_check_branch
    %103 = sbr.rel (0) target = $region17
  $region16: #{lut_generator_forward.2} parent=0 // pred_region
    _
  $region17: #{lut_generator_forward.2} parent=0 // pred_fallthru
    _
  // Predicated region
  $region18: #{lut_generator_forward.2} parent=0 // pred_check
    _
  $region19: #{lut_generator_forward.2} parent=0 // pred_check_branch
    %105 = sbr.rel (0) target = $region21
  $region20: #{lut_generator_forward.2} parent=0 // pred_region
    _
  $region21: #{lut_generator_forward.2} parent=0 // pred_fallthru
    _

// kernel: lut_generator_forward.3
$region0: #{lut_generator_forward.3}
  #allocation0 [shape = 'u32[]', space=smem, size = 0x4, offset = 0x4, fixed_abs, tag = 'smem constant byte address 0x4 - core index']
  #allocation1 [shape = 'u32[144,128]{1,0:T(1,128)}', space=vmem, size = 0x12000, scoped, tag = 'internal scratch']
  %s0 = inlined_call_operand.vmem [shape: f32[2,8], index: 0, kind: input, shape index: {}]
  %s1 = inlined_call_operand.hbm [shape: f32[8,1536], index: 1, kind: input, shape index: {}]
  %s2 = inlined_call_operand.vmem [shape: f32[2,1536], index: 2, kind: output, shape index: {}]
  %s3 = sld [smem:[#allocation0]]
  $region45: #{lut_generator_forward.3} parent=0
    _
  %s5 = ssub.s32 1, %s3
  %s6 = scalar_select 0, %s5, %s3
  $region1: #{lut_generator_forward.3} parent=0
    #allocation2 [shape = 'u8[32768]{0}', space=vmem, size = 0x8000, scoped, tag = 'input window, operand 1']
    #allocation3 [shape = 's32[2]{0}', space=sflag, size = 0x8, scoped, tag = 'scoped memory for lut_generator_forward.3']
    %7 = vsyncpa [#allocation3], 0
    %s8 = scalar_lea.sflag [#allocation3], 1
    %9 = vsyncpa %s8, 0
    loop: start=0, step=1, limit=5
    $region2: #{lut_generator_forward.3} parent=1 // loop_pre_header
      _
    $region3: #{lut_generator_forward.3} parent=1 // loop_header
      %s11 = sphi 0, %s15
      %p12 = scmp.ge.s32.totalorder %s11, 5
      %s19 = sphi 0, %s19
      %s21 = sphi 0, %s19
      %s22 = sphi 0, %s21
      %s36 = sphi 0, %s22
      %s42 = sphi 0, %s44
      %s45 = sphi 0, %s42
      %s46 = sphi 0, %s45
      %s62 = sphi 0, %s46
      %s68 = sphi 0, %s70
      %s71 = sphi 0, %s68
      %s72 = sphi 0, %s71
      %s88 = sphi 0, %s72
    $region4: #{lut_generator_forward.3} parent=1 // loop_header_branch
      %14 = sbr.rel (%p12) target = $region8
    $region5: #{lut_generator_forward.3} parent=1 // loop_body
      %s16 = ssub.s32 %s11, 1
      %s17 = ssub.s32 %s11, 2
      %s18 = sadd.s32 %s11, 1
      %s20 = sadd.s32 %s19, 1
      %p23 = scmp.eq.s32.totalorder %s11, 2
      %p24 = scmp.ne.s32.totalorder %s19, %s21
      %p25 = scmp.eq.s32.totalorder %s11, 0
      %p26 = por %p24, %p25
      %p27 = scmp.ne.s32.totalorder %s19, %s21
      %p28 = scmp.eq.s32.totalorder %s16, 2
      %p29 = por %p27, %p28
      %p30 = scmp.ne.s32.totalorder %s21, %s22
      %p31 = scmp.eq.s32.totalorder %s16, 0
      %p32 = por %p30, %p31
      %p33 = scmp.ne.s32.totalorder %s21, %s22
      %p34 = scmp.eq.s32.totalorder %s17, 2
      %p35 = por %p33, %p34
      %p37 = scmp.ne.s32.totalorder %s22, %s36
      %p38 = scmp.eq.s32.totalorder %s17, 0
      %p39 = por %p37, %p38
      %s40 = ssub.s32 %s11, %s18
      %p41 = scmp.eq.s32.totalorder %s40, 0
      %s43 = sadd.s32 %s42, 1
      %s44 = scalar_select %p41, %s42, %s43
      %p47 = pneg %p41
      %p48 = scmp.eq.s32.totalorder %s11, 2
      %p49 = por %p47, %p48
      %p50 = scmp.ne.s32.totalorder %s42, %s45
      %p51 = scmp.eq.s32.totalorder %s11, 0
      %p52 = por %p50, %p51
      %p53 = scmp.ne.s32.totalorder %s42, %s45
      %p54 = scmp.eq.s32.totalorder %s16, 2
      %p55 = por %p53, %p54
      %p56 = scmp.ne.s32.totalorder %s45, %s46
      %p57 = scmp.eq.s32.totalorder %s16, 0
      %p58 = por %p56, %p57
      %p59 = scmp.ne.s32.totalorder %s45, %s46
      %p60 = scmp.eq.s32.totalorder %s17, 2
      %p61 = por %p59, %p60
      %p63 = scmp.ne.s32.totalorder %s46, %s62
      %p64 = scmp.eq.s32.totalorder %s17, 0
      %p65 = por %p63, %p64
      %s66 = ssub.s32 %s11, %s18
      %p67 = scmp.eq.s32.totalorder %s66, 0
      %s69 = sadd.s32 %s68, 1
      %s70 = scalar_select %p67, %s68, %s69
      %p73 = pneg %p67
      %p74 = scmp.eq.s32.totalorder %s11, 2
      %p75 = por %p73, %p74
      %p76 = scmp.ne.s32.totalorder %s68, %s71
      %p77 = scmp.eq.s32.totalorder %s11, 0
      %p78 = por %p76, %p77
      %p79 = scmp.ne.s32.totalorder %s68, %s71
      %p80 = scmp.eq.s32.totalorder %s16, 2
      %p81 = por %p79, %p80
      %p82 = scmp.ne.s32.totalorder %s71, %s72
      %p83 = scmp.eq.s32.totalorder %s16, 0
      %p84 = por %p82, %p83
      %p85 = scmp.ne.s32.totalorder %s71, %s72
      %p86 = scmp.eq.s32.totalorder %s17, 2
      %p87 = por %p85, %p86
      %p89 = scmp.ne.s32.totalorder %s72, %s88
      %p90 = scmp.eq.s32.totalorder %s17, 0
      %p91 = por %p89, %p90
      %p92 = scmp.le.s32.totalorder 1, %s11
      %p93 = scmp.lt.s32.totalorder %s11, 4
      %p94 = pnand %p92, %p93
      %p95 = pneg %p94
      // Predicated region
      $region9: #{lut_generator_forward.3} parent=5 // pred_check
        _
      $region10: #{lut_generator_forward.3} parent=5 // pred_check_branch
        %97 = sbr.rel (%p94) target = $region12
      $region11: #{lut_generator_forward.3} parent=5 // pred_region
        %s98 = ssub.s32 %s11, 1
        // Predicated region
        $region13: #{lut_generator_forward.3} parent=11 // pred_check
          %p99 = pneg %p32
        $region14: #{lut_generator_forward.3} parent=11 // pred_check_branch
          %101 = sbr.rel (%p99) target = $region16
        $region15: #{lut_generator_forward.3} parent=11 // pred_region
          _
        $region16: #{lut_generator_forward.3} parent=11 // pred_fallthru
          _
      $region12: #{lut_generator_forward.3} parent=5 // pred_fallthru
        _
      %p102 = scmp.lt.s32.totalorder %s11, 3
      // Predicated region
      $region17: #{lut_generator_forward.3} parent=5 // pred_check
        %p103 = pneg %p102
      $region18: #{lut_generator_forward.3} parent=5 // pred_check_branch
        %105 = sbr.rel (%p103) target = $region20
      $region19: #{lut_generator_forward.3} parent=5 // pred_region
        // Predicated region
        $region21: #{lut_generator_forward.3} parent=19 // pred_check
          %p106 = pneg %p52
        $region22: #{lut_generator_forward.3} parent=19 // pred_check_branch
          %108 = sbr.rel (%p106) target = $region24
        $region23: #{lut_generator_forward.3} parent=19 // pred_region
          %s109 = sand.u32 %s42, 1
          %s110 = scalar_lea.sflag [#allocation3], %s109
          %s111 = sand.u32 %s42, 1
          %s112 = smul.addr %s111, 32
          %s113 = scalar_lea.vmem [#allocation2], %s112
          %s114 = smul.u32 4, %s11
          %s116 = ssub.s32 512, 512
          %117 = vsyncadd %s110, %s116
          %s118 = smul.addr %s114, 128
          %s119 = scalar_lea.hbm %s1, %s118
          %s121 = sshll.u32 %s113, 4
          %s122 = int_to_ptr.vmem [resolvable:$true] %s121
          %124 = dma.hbm_to_vmem [thread:$0]  %s119, 512, %s122, %s110
        $region24: #{lut_generator_forward.3} parent=19 // pred_fallthru
          _
      $region20: #{lut_generator_forward.3} parent=5 // pred_fallthru
        _
      %p125 = scmp.le.s32.totalorder 1, %s11
      %p126 = scmp.lt.s32.totalorder %s11, 4
      %p127 = pnand %p125, %p126
      %p128 = pneg %p127
      // Predicated region
      $region25: #{lut_generator_forward.3} parent=5 // pred_check
        _
      $region26: #{lut_generator_forward.3} parent=5 // pred_check_branch
        %130 = sbr.rel (%p127) target = $region28
      $region27: #{lut_generator_forward.3} parent=5 // pred_region
        %s131 = ssub.s32 %s11, 1
        %s132 = sand.u32 %s45, 1
        %s133 = scalar_lea.sflag [#allocation3], %s132
        %s134 = sand.u32 %s45, 1
        %s135 = smul.addr %s134, 32
        %s136 = scalar_lea.vmem [#allocation2], %s135
        // Predicated region
        $region29: #{lut_generator_forward.3} parent=27 // pred_check
          %p137 = pneg %p58
        $region30: #{lut_generator_forward.3} parent=27 // pred_check_branch
          %139 = sbr.rel (%p137) target = $region32
        $region31: #{lut_generator_forward.3} parent=27 // pred_region
          %140 = dma.done %s133, 512
        $region32: #{lut_generator_forward.3} parent=27 // pred_fallthru
          _
        %p141 = pneg %p32
        %p142 = pneg %p29
        %s143 = sand.u32 %s45, 1
        %s144 = scalar_lea.sflag [#allocation3], %s143
        %s145 = sand.u32 %s45, 1
        %s146 = smul.addr %s145, 32
        %s147 = scalar_lea.vmem [#allocation2], %s146
        %p148 = pneg %p58
        %p149 = pneg %p55
        %p150 = pneg %p84
        %p151 = pneg %p81
        %s152 = smul.u32 4, %s16
        %p153 = scmp.lt.s32.totalorder %s152, 11
        %s154 = scalar_select %p153, %s152, 11
        %s155 = smul.addr %s154, 2
        %s156 = scalar_lea.vmem %s2, %s155
        %s157 = smul.u32 4, %s16
        %s158 = smul.u32 4, %s16
        %p159 = scmp.lt.s32.totalorder %s158, 11
        %s160 = scalar_select %p159, %s158, 11
        %s161 = smul.addr %s160, 2
        %s162 = scalar_lea.vmem %s2, %s161
        %s163 = smul.u32 4, %s16
        %v164 = vld [vmem:[%s0] sm:$0x3]
        %v165 = vld [vmem:[%s136] sm:$0xff]
        %v166 = vld [vmem:[%s136 + $0x8] sm:$0xff]
        %v167 = vld [vmem:[%s136 + $0x10] sm:$0xff]
        %v168 = vld [vmem:[%s136 + $0x18] sm:$0xff]
        %vm169 = vcmask 64512
        %v171 = vsel %vm169, %v164, 0
        %173 = vmatprep.subr.mxu0 %v166
        %174 = vmatpush1.msra.mxu0 %v165
        %175 = vmatprep.subr.mxu0 0.0
        %176 = vmatpush1.msra.mxu0 0.0
        %177 = vmatprep.subr.mxu0 0.0
        %178 = vmatpush1.msra.mxu0 0.0
        %179 = vmatprep.subr.mxu0 0.0
        %180 = vmatpush1.msra.mxu0 0.0
        %181 = vmatprep.subr.mxu0 0.0
        %182 = vmatpush1.msra.mxu0 0.0
        %183 = vmatprep.subr.mxu0 0.0
        %184 = vmatpush1.msra.mxu0 0.0
        %185 = vmatprep.subr.mxu0 0.0
        %186 = vmatpush1.msra.mxu0 0.0
        %187 = vmatprep.subr.mxu0 0.0
        %188 = vmatpush1.msra.mxu0 0.0
        %189 = vmatprep.subr.mxu0 0.0
        %190 = vmatpush1.msra.mxu0 0.0
        %191 = vmatprep.subr.mxu0 0.0
        %192 = vmatpush1.msra.mxu0 0.0
        %193 = vmatprep.subr.mxu0 0.0
        %194 = vmatpush1.msra.mxu0 0.0
        %195 = vmatprep.subr.mxu0 0.0
        %196 = vmatpush1.msra.mxu0 0.0
        %197 = vmatprep.subr.mxu0 0.0
        %198 = vmatpush1.msra.mxu0 0.0
        %199 = vmatprep.subr.mxu0 0.0
        %200 = vmatpush1.msra.mxu0 0.0
        %201 = vmatprep.subr.mxu0 0.0
        %202 = vmatpush1.msra.mxu0 0.0
        %203 = vmatprep.subr.mxu0 0.0
        %204 = vmatpush1.msra.mxu0 0.0
        %205 = vmatprep.subr.mxu0 0.0
        %206 = vmatpush1.msra.mxu0 0.0
        %207 = vmatprep.subr.mxu0 0.0
        %208 = vmatpush1.msra.mxu0 0.0
        %209 = vmatprep.subr.mxu0 0.0
        %210 = vmatpush1.msra.mxu0 0.0
        %211 = vmatprep.subr.mxu0 0.0
        %212 = vmatpush1.msra.mxu0 0.0
        %213 = vmatprep.subr.mxu0 0.0
        %214 = vmatpush1.msra.mxu0 0.0
        %215 = vmatprep.subr.mxu0 0.0
        %216 = vmatpush1.msra.mxu0 0.0
        %217 = vmatprep.subr.mxu0 0.0
        %218 = vmatpush1.msra.mxu0 0.0
        %219 = vmatprep.subr.mxu0 0.0
        %220 = vmatpush1.msra.mxu0 0.0
        %221 = vmatprep.subr.mxu0 0.0
        %222 = vmatpush1.msra.mxu0 0.0
        %223 = vmatprep.subr.mxu0 0.0
        %224 = vmatpush1.msra.mxu0 0.0
        %225 = vmatprep.subr.mxu0 0.0
        %226 = vmatpush1.msra.mxu0 0.0
        %227 = vmatprep.subr.mxu0 0.0
        %228 = vmatpush1.msra.mxu0 0.0
        %229 = vmatprep.subr.mxu0 0.0
        %230 = vmatpush1.msra.mxu0 0.0
        %231 = vmatprep.subr.mxu0 0.0
        %232 = vmatpush1.msra.mxu0 0.0
        %233 = vmatprep.subr.mxu0 0.0
        %234 = vmatpush1.msra.mxu0 0.0
        %235 = vmatprep.subr.mxu0 0.0
        %236 = vmatpush1.msra.mxu0 0.0
        %237 = vmatprep.mubr.f32.mxu0 0.0
        %238 = vmatmul.mubr.f32.gmra.mrb[0].mxu0 %v171
        %v239 = vpop.f32.mrb[0].mxu0
        %v240 = vadd.f32 0.0, %v239
        %v241 = vpop.f32.mrb[0].mxu0
        %v242 = vadd.f32 0.0, %v241
        %243 = vdwg.mxu0
        %244 = vmatprep.subr.mxu0 %v168
        %245 = vmatpush1.msra.mxu0 %v167
        %246 = vmatprep.subr.mxu0 0.0
        %247 = vmatpush1.msra.mxu0 0.0
        %248 = vmatprep.subr.mxu0 0.0
        %249 = vmatpush1.msra.mxu0 0.0
        %250 = vmatprep.subr.mxu0 0.0
        %251 = vmatpush1.msra.mxu0 0.0
        %252 = vmatprep.subr.mxu0 0.0
        %253 = vmatpush1.msra.mxu0 0.0
        %254 = vmatprep.subr.mxu0 0.0
        %255 = vmatpush1.msra.mxu0 0.0
        %256 = vmatprep.subr.mxu0 0.0
        %257 = vmatpush1.msra.mxu0 0.0
        %258 = vmatprep.subr.mxu0 0.0
        %259 = vmatpush1.msra.mxu0 0.0
        %260 = vmatprep.subr.mxu0 0.0
        %261 = vmatpush1.msra.mxu0 0.0
        %262 = vmatprep.subr.mxu0 0.0
        %263 = vmatpush1.msra.mxu0 0.0
        %264 = vmatprep.subr.mxu0 0.0
        %265 = vmatpush1.msra.mxu0 0.0
        %266 = vmatprep.subr.mxu0 0.0
        %267 = vmatpush1.msra.mxu0 0.0
        %268 = vmatprep.subr.mxu0 0.0
        %269 = vmatpush1.msra.mxu0 0.0
        %270 = vmatprep.subr.mxu0 0.0
        %271 = vmatpush1.msra.mxu0 0.0
        %272 = vmatprep.subr.mxu0 0.0
        %273 = vmatpush1.msra.mxu0 0.0
        %274 = vmatprep.subr.mxu0 0.0
        %275 = vmatpush1.msra.mxu0 0.0
        %276 = vmatprep.subr.mxu0 0.0
        %277 = vmatpush1.msra.mxu0 0.0
        %278 = vmatprep.subr.mxu0 0.0
        %279 = vmatpush1.msra.mxu0 0.0
        %280 = vmatprep.subr.mxu0 0.0
        %281 = vmatpush1.msra.mxu0 0.0
        %282 = vmatprep.subr.mxu0 0.0
        %283 = vmatpush1.msra.mxu0 0.0
        %284 = vmatprep.subr.mxu0 0.0
        %285 = vmatpush1.msra.mxu0 0.0
        %286 = vmatprep.subr.mxu0 0.0
        %287 = vmatpush1.msra.mxu0 0.0
        %288 = vmatprep.subr.mxu0 0.0
        %289 = vmatpush1.msra.mxu0 0.0
        %290 = vmatprep.subr.mxu0 0.0
        %291 = vmatpush1.msra.mxu0 0.0
        %292 = vmatprep.subr.mxu0 0.0
        %293 = vmatpush1.msra.mxu0 0.0
        %294 = vmatprep.subr.mxu0 0.0
        %295 = vmatpush1.msra.mxu0 0.0
        %296 = vmatprep.subr.mxu0 0.0
        %297 = vmatpush1.msra.mxu0 0.0
        %298 = vmatprep.subr.mxu0 0.0
        %299 = vmatpush1.msra.mxu0 0.0
        %300 = vmatprep.subr.mxu0 0.0
        %301 = vmatpush1.msra.mxu0 0.0
        %302 = vmatprep.subr.mxu0 0.0
        %303 = vmatpush1.msra.mxu0 0.0
        %304 = vmatprep.subr.mxu0 0.0
        %305 = vmatpush1.msra.mxu0 0.0
        %306 = vmatprep.subr.mxu0 0.0
        %307 = vmatpush1.msra.mxu0 0.0
        %308 = vmatprep.mubr.f32.mxu0 0.0
        %309 = vmatmul.mubr.f32.gmra.mrb[0].mxu0 %v171
        %v310 = vpop.f32.mrb[0].mxu0
        %v311 = vadd.f32 0.0, %v310
        %v312 = vpop.f32.mrb[0].mxu0
        %v313 = vadd.f32 0.0, %v312
        %314 = vdwg.mxu0
        %v319 = vcombine.low %v240, %v242
        %v320 = vcombine.low %v311, %v313
        %v322 = vunpack.c.l.s4 1983009808
        %v323 = vunpack.c.0.s8 %v322
        %v324 = vlaneseq
        %v325 = vshrl.u32 %v324, 7
        %v326 = vsub.s32 %v323, %v325
        %v327 = vrot.slane %v319, %v326
        %v329 = vunpack.c.l.s4 1983009808
        %v330 = vunpack.c.0.s8 %v329
        %v331 = vlaneseq
        %v332 = vshrl.u32 %v331, 7
        %v333 = vsub.s32 %v330, %v332
        %v334 = vrot.slane %v320, %v333
        %v335 = vcombine.low %v327, %v334
        %337 = vst [vmem:[%s162] sm:$0xff] %v335
        %s338 = smul.u32 4, %s16
        %p339 = scmp.lt.s32.totalorder %s338, 11
        %s340 = scalar_select %p339, %s338, 11
        %s341 = smul.addr %s340, 2
        %s342 = scalar_lea.vmem %s2, %s341
        // Predicated region
        $region33: #{lut_generator_forward.3} parent=27 // pred_check
          %p343 = pneg %p81
        $region34: #{lut_generator_forward.3} parent=27 // pred_check_branch
          %345 = sbr.rel (%p343) target = $region36
        $region35: #{lut_generator_forward.3} parent=27 // pred_region
          %s346 = smul.u32 4, %s16
        $region36: #{lut_generator_forward.3} parent=27 // pred_fallthru
          _
      $region28: #{lut_generator_forward.3} parent=5 // pred_fallthru
        _
      %p347 = scmp.le.s32.totalorder 2, %s11
      // Predicated region
      $region37: #{lut_generator_forward.3} parent=5 // pred_check
        %p348 = pneg %p347
      $region38: #{lut_generator_forward.3} parent=5 // pred_check_branch
        %350 = sbr.rel (%p348) target = $region40
      $region39: #{lut_generator_forward.3} parent=5 // pred_region
        %s351 = ssub.s32 %s11, 2
        // Predicated region
        $region41: #{lut_generator_forward.3} parent=39 // pred_check
          %p352 = pneg %p87
        $region42: #{lut_generator_forward.3} parent=39 // pred_check_branch
          %354 = sbr.rel (%p352) target = $region44
        $region43: #{lut_generator_forward.3} parent=39 // pred_region
          %s355 = smul.u32 4, %s17
          %p356 = scmp.lt.s32.totalorder %s355, 11
          %s357 = scalar_select %p356, %s355, 11
          %s358 = smul.addr %s357, 2
          %s359 = scalar_lea.vmem %s2, %s358
        $region44: #{lut_generator_forward.3} parent=39 // pred_fallthru
          _
      $region40: #{lut_generator_forward.3} parent=5 // pred_fallthru
        _
    $region6: #{lut_generator_forward.3} parent=1 // loop_footer
      %s15 = sadd.s32 1, %s11
    $region7: #{lut_generator_forward.3} parent=1 // loop_footer_branch
      %10 = sbr.rel target = $region3
    $region8: #{lut_generator_forward.3} parent=1 // loop_exit
      _
    %360 = vsyncpa [#allocation3], 1
    %s361 = scalar_lea.sflag [#allocation3], 1
    %362 = vsyncpa %s361, 1

</llo_original>
